<compile_context>
chip_gen: v7x
topology: tpu7x:2x2x1
jax: 0.10.0
libtpu: 0.0.40
codegen_flags: <defaults>
</compile_context>

<pallas_src>
import functools

import jax
import jax.numpy as jnp
from jax.experimental import pallas as pl
from jax.experimental.pallas import tpu as pltpu


def _mixnet3_kernel(n_agents, gs_ref, wfs_ref, wfa_ref, bf_ref,
                    whead_ref, bhead_ref, out_ref):
    """One batch-tile per grid step; weights stay VMEM-resident across steps.

    gs_ref    : (tb, S)     global-state tile
    wfs_ref   : (S, H)      state part of f_v weight (stored transposed)
    wfa_ref   : (A, H)      agent (one-hot) part of f_v weight (transposed)
    bf_ref    : (1, H)      f_v bias
    whead_ref : (H, P)      [w_v | b_v] fused head weight, lane-padded to P
    bhead_ref : (1, P)      fused head bias, lane-padded to P
    out_ref   : (A, tb, P)  out[a, i] = head(relu(f_v([gs_i, onehot_a])))
    """
    A = n_agents
    gs = gs_ref[...]                                                   # (tb, S)

    # Shared state matmul + bias: computed once, reused for every agent.
    base = jnp.dot(gs, wfs_ref[...],
                   preferred_element_type=jnp.float32) + bf_ref[...]  # (tb, H)
    tb, H = base.shape

    # One-hot concat folded into a single broadcast add of row `a` of the
    # agent weight.  Agent-major so each (tb, H) slab is sublane-aligned.
    h = jnp.maximum(base[None, :, :] + wfa_ref[...][:, None, :], 0.0)  # (A,tb,H)
    h = h.reshape(A * tb, H)

    # Single fused head matmul (w_v and b_v together), lane-dense output.
    out = jnp.dot(h, whead_ref[...],
                  preferred_element_type=jnp.float32) + bhead_ref[...]  # (A*tb,P)

    # abs() applies only to the w columns (0..A-1); column A is the b head.
    col = jax.lax.broadcasted_iota(jnp.int32, out.shape, 1)
    out = jnp.where(col < A, jnp.abs(out), out)
    out_ref[...] = out.reshape(A, tb, out.shape[-1])


def _head_pad(n_agents):
    """Lane padding for the fused (w_v | b_v) head output."""
    cols = n_agents + 1
    if cols <= 128:
        return 128                       # optimal on v5e; half-pass on v6e/v7x
    return ((cols + 255) // 256) * 256   # align to 256-wide MXU on v6e/v7x


def _pick_batch_tile(batch):
    """Largest sublane-aligned tile that divides the batch."""
    for tb in (512, 256, 128, 64, 32, 16, 8):
        if batch % tb == 0:
            return tb
    return batch  # odd / tiny batch: one full-extent block (still legal)


def prepare_params(raw, n_agents):
    """One-time param prep: fuse the two heads and pad the lane axis.

    Runs OUTSIDE the per-call jit so the concat/pad never re-executes.
    """
    A = n_agents
    P = _head_pad(A)
    pad = P - (A + 1)
    w_head = jnp.pad(jnp.concatenate([raw["ww"], raw["wb"]], axis=1),
                     ((0, 0), (0, pad)))                               # (H, P)
    b_head = jnp.pad(jnp.concatenate([raw["bw"], raw["bb"]], axis=1),
                     ((0, 0), (0, pad)))                               # (1, P)
    return {
        "wf_state": raw["wf_state"],     # (S, H)
        "wf_agent": raw["wf_agent"],     # (A, H)
        "bf": raw["bf"],                 # (1, H)
        "w_head": w_head,                # (H, P)
        "b_head": b_head,                # (1, P)
    }


@functools.partial(jax.jit, static_argnums=2)
def mixnet3_forward(global_state, params, n_agents):
    """params: output of prepare_params (pre-fused, pre-padded)."""
    B, S = global_state.shape
    A = n_agents
    wfs = params["wf_state"]
    wfa = params["wf_agent"]
    bf = params["bf"]
    w_head = params["w_head"]
    b_head = params["b_head"]
    H = wfs.shape[1]
    P = w_head.shape[1]

    tb = _pick_batch_tile(B)
    grid = (B // tb,)

    cost = pl.CostEstimate(
        flops=2 * B * S * H + 2 * A * B * H * (A + 1),   # real head width, not P
        transcendentals=0,
        bytes_accessed=4 * (B * S + S * H + A * H + H + H * P + P + A * B * P),
    )

    out = pl.pallas_call(
        functools.partial(_mixnet3_kernel, A),
        out_shape=jax.ShapeDtypeStruct((A, B, P), jnp.float32),
        grid=grid,
        in_specs=[
            pl.BlockSpec((tb, S), lambda i: (i, 0)),   # gs: streamed by batch tile
            pl.BlockSpec((S, H), lambda i: (0, 0)),    # weights: constant index_map,
            pl.BlockSpec((A, H), lambda i: (0, 0)),    # stay resident across steps
            pl.BlockSpec((1, H), lambda i: (0, 0)),
            pl.BlockSpec((H, P), lambda i: (0, 0)),
            pl.BlockSpec((1, P), lambda i: (0, 0)),
        ],
        out_specs=pl.BlockSpec((A, tb, P), lambda i: (0, i, 0)),
        compiler_params=pltpu.CompilerParams(
            dimension_semantics=("parallel",)),        # shards batch across TCs (v7x)
        cost_estimate=cost,
    )(global_state, wfs, wfa, bf, w_head, b_head)

    # Layout plumbing back to the module's (B, A, A) / (B, A) outputs.
    w_stack = jnp.transpose(out[:, :, :A], (1, 0, 2))                  # (B, A, A)
    b_stack = jnp.transpose(out[:, :, A], (1, 0))                      # (B, A)
    return w_stack, b_stack


def _init_params(key, num_state, num_agent, num_hidden):
    """Deterministic init mimicking nn.Linear default (uniform +/- 1/sqrt(fan_in))."""
    S = num_state * num_agent
    in_f = S + num_agent
    k1, k2, k3, k4, k5, k6 = jax.random.split(key, 6)

    def u(k, shape, fan_in):
        lim = 1.0 / jnp.sqrt(jnp.float32(fan_in))
        return jax.random.uniform(k, shape, jnp.float32, -lim, lim)

    # f_v: Linear(in_f, H).  PyTorch weight is (H, in_f); store transposed (in_f, H).
    wf_full = u(k1, (in_f, num_hidden), in_f)
    return {
        "wf_state": wf_full[:S, :],                          # (S, H)
        "wf_agent": wf_full[S:, :],                          # (A, H)
        "bf": u(k2, (1, num_hidden), in_f),                  # (1, H)
        "ww": u(k3, (num_hidden, num_agent), num_hidden),    # (H, A)
        "bw": u(k4, (1, num_agent), num_hidden),             # (1, A)
        "wb": u(k5, (num_hidden, 1), num_hidden),            # (H, 1)
        "bb": u(k6, (1, 1), num_hidden),                     # (1, 1)
    }


def _reference(global_state, raw, n_agents):
    """Pure-JAX replica of the PyTorch forward for verification."""
    B = global_state.shape[0]
    wf_full = jnp.concatenate([raw["wf_state"], raw["wf_agent"]], axis=0)
    w_list, b_list = [], []
    for a in range(n_agents):
        one_hot = jnp.zeros((B, n_agents), jnp.float32).at[:, a].set(1.0)
        inp = jnp.concatenate([global_state, one_hot], axis=-1)
        x = jax.nn.relu(inp @ wf_full + raw["bf"])
        w = (x @ raw["ww"] + raw["bw"]).reshape(B, 1, n_agents)
        b = (x @ raw["wb"] + raw["bb"]).reshape(B, 1)
        w_list.append(w)
        b_list.append(b)
    return jnp.abs(jnp.concatenate(w_list, axis=1)), jnp.concatenate(b_list, axis=1)


if __name__ == "__main__":
    num_state = 4
    num_agent = 4
    num_hidden = 32
    batch = 8
    S = num_state * num_agent

    key = jax.random.PRNGKey(0)
    k_p, k_x = jax.random.split(key)
    raw = _init_params(k_p, num_state, num_agent, num_hidden)
    params = jax.block_until_ready(prepare_params(raw, num_agent))  # one-time prep
    global_state = jax.random.normal(k_x, (batch, S), jnp.float32)

    w_stack, b_stack = mixnet3_forward(global_state, params, num_agent)
    jax.block_until_ready((w_stack, b_stack))

    w_ref, b_ref = _reference(global_state, raw, num_agent)
    assert w_stack.shape == (batch, num_agent, num_agent)
    assert b_stack.shape == (batch, num_agent)
    assert jnp.allclose(w_stack, w_ref, rtol=1e-5, atol=1e-5)
    assert jnp.allclose(b_stack, b_ref, rtol=1e-5, atol=1e-5)

    print("KERNEL_OK")
</pallas_src>

<mosaic_0001>
module attributes {stable_mosaic.version = 11 : i64} {
  func.func @_mixnet3_kernel(%arg0: i32, %arg1: memref<8x16xf32, #tpu.memory_space<vmem>>, %arg2: memref<16x32xf32, #tpu.memory_space<vmem>>, %arg3: memref<4x32xf32, #tpu.memory_space<vmem>>, %arg4: memref<1x32xf32, #tpu.memory_space<vmem>>, %arg5: memref<32x128xf32, #tpu.memory_space<vmem>>, %arg6: memref<1x128xf32, #tpu.memory_space<vmem>>, %arg7: memref<4x8x128xf32, #tpu.memory_space<vmem>>) attributes {dimension_semantics = [#tpu.dimension_semantics<parallel>], iteration_bounds = array<i64: 1>, scalar_prefetch = 0 : i64, scratch_operands = 0 : i64, tpu.core_type = #tpu.core_type<tc>, window_params = [{transform_indices = @transform_0, window_bounds = array<i64: 8, 16>}, {pipeline_mode = #tpu.pipeline_mode<synchronous>, transform_indices = @transform_1, window_bounds = array<i64: 16, 32>}, {pipeline_mode = #tpu.pipeline_mode<synchronous>, transform_indices = @transform_2, window_bounds = array<i64: 4, 32>}, {pipeline_mode = #tpu.pipeline_mode<synchronous>, transform_indices = @transform_3, window_bounds = array<i64: 1, 32>}, {pipeline_mode = #tpu.pipeline_mode<synchronous>, transform_indices = @transform_4, window_bounds = array<i64: 32, 128>}, {pipeline_mode = #tpu.pipeline_mode<synchronous>, transform_indices = @transform_5, window_bounds = array<i64: 1, 128>}, {transform_indices = @transform_6, window_bounds = array<i64: 4, 8, 128>}]} {
    %c0 = arith.constant 0 : index
    %c0_0 = arith.constant 0 : index
    %0 = vector.load %arg1[%c0, %c0_0] : memref<8x16xf32, #tpu.memory_space<vmem>>, vector<8x16xf32>
    %c0_1 = arith.constant 0 : index
    %c0_2 = arith.constant 0 : index
    %1 = vector.load %arg2[%c0_1, %c0_2] : memref<16x32xf32, #tpu.memory_space<vmem>>, vector<16x32xf32>
    %cst = arith.constant dense<0.000000e+00> : vector<8x32xf32>
    %2 = tpu.matmul %0, %1, %cst {dimension_numbers = #tpu.dot_dimension_numbers<[1], [0], [0], [1], [0, 0, 1, 1], [], []>} : vector<8x16xf32>, vector<16x32xf32>, vector<8x32xf32> -> vector<8x32xf32>
    %c0_3 = arith.constant 0 : index
    %c0_4 = arith.constant 0 : index
    %3 = vector.load %arg4[%c0_3, %c0_4] : memref<1x32xf32, #tpu.memory_space<vmem>>, vector<1x32xf32>
    %4 = vector.broadcast %3 : vector<1x32xf32> to vector<8x32xf32>
    %5 = arith.addf %2, %4 : vector<8x32xf32>
    %6 = vector.shape_cast %5 : vector<8x32xf32> to vector<1x8x32xf32>
    %c0_5 = arith.constant 0 : index
    %c0_6 = arith.constant 0 : index
    %7 = vector.load %arg3[%c0_5, %c0_6] : memref<4x32xf32, #tpu.memory_space<vmem>>, vector<4x32xf32>
    %8 = vector.shape_cast %7 : vector<4x32xf32> to vector<4x1x32xf32>
    %9 = vector.broadcast %6 : vector<1x8x32xf32> to vector<4x8x32xf32>
    %10 = vector.broadcast %8 : vector<4x1x32xf32> to vector<4x8x32xf32>
    %11 = arith.addf %9, %10 : vector<4x8x32xf32>
    %cst_7 = arith.constant 0.000000e+00 : f32
    %12 = vector.broadcast %cst_7 : f32 to vector<4x8x32xf32>
    %13 = arith.maximumf %11, %12 : vector<4x8x32xf32>
    %14 = vector.shape_cast %13 : vector<4x8x32xf32> to vector<32x32xf32>
    %c0_8 = arith.constant 0 : index
    %c0_9 = arith.constant 0 : index
    %15 = vector.load %arg5[%c0_8, %c0_9] : memref<32x128xf32, #tpu.memory_space<vmem>>, vector<32x128xf32>
    %cst_10 = arith.constant dense<0.000000e+00> : vector<32x128xf32>
    %16 = tpu.matmul %14, %15, %cst_10 {dimension_numbers = #tpu.dot_dimension_numbers<[1], [0], [0], [1], [0, 0, 1, 1], [], []>} : vector<32x32xf32>, vector<32x128xf32>, vector<32x128xf32> -> vector<32x128xf32>
    %c0_11 = arith.constant 0 : index
    %c0_12 = arith.constant 0 : index
    %17 = vector.load %arg6[%c0_11, %c0_12] : memref<1x128xf32, #tpu.memory_space<vmem>>, vector<1x128xf32>
    %18 = vector.broadcast %17 : vector<1x128xf32> to vector<32x128xf32>
    %19 = arith.addf %16, %18 : vector<32x128xf32>
    %20 = tpu.iota {dimensions = array<i32: 1>} : vector<32x128xi32>
    %c4_i32 = arith.constant 4 : i32
    %21 = vector.broadcast %c4_i32 : i32 to vector<32x128xi32>
    %22 = arith.cmpi slt, %20, %21 : vector<32x128xi32>
    %23 = math.absf %19 : vector<32x128xf32>
    %24 = arith.select %22, %23, %19 : vector<32x128xi1>, vector<32x128xf32>
    %25 = vector.shape_cast %24 : vector<32x128xf32> to vector<4x8x128xf32>
    %c0_13 = arith.constant 0 : index
    %c0_14 = arith.constant 0 : index
    %c0_15 = arith.constant 0 : index
    %26 = vector.load %arg7[%c0_13, %c0_14, %c0_15] : memref<4x8x128xf32, #tpu.memory_space<vmem>>, vector<4x8x128xf32>
    tpu.vector_store %arg7[%c0_13, %c0_14, %c0_15], %25 {strides = array<i32>} : memref<4x8x128xf32, #tpu.memory_space<vmem>>, vector<4x8x128xf32>,
    return
  }
  func.func @transform_0(%arg0: i32) -> (i32, i32) {
    %c0_i32 = arith.constant 0 : i32
    %c0_i32_0 = arith.constant 0 : i32
    return %arg0, %c0_i32 : i32, i32
  }
  func.func @transform_1(%arg0: i32) -> (i32, i32) {
    %c0_i32 = arith.constant 0 : i32
    %c0_i32_0 = arith.constant 0 : i32
    %c0_i32_1 = arith.constant 0 : i32
    return %c0_i32, %c0_i32_0 : i32, i32
  }
  func.func @transform_2(%arg0: i32) -> (i32, i32) {
    %c0_i32 = arith.constant 0 : i32
    %c0_i32_0 = arith.constant 0 : i32
    %c0_i32_1 = arith.constant 0 : i32
    return %c0_i32, %c0_i32_0 : i32, i32
  }
  func.func @transform_3(%arg0: i32) -> (i32, i32) {
    %c0_i32 = arith.constant 0 : i32
    %c0_i32_0 = arith.constant 0 : i32
    %c0_i32_1 = arith.constant 0 : i32
    return %c0_i32, %c0_i32_0 : i32, i32
  }
  func.func @transform_4(%arg0: i32) -> (i32, i32) {
    %c0_i32 = arith.constant 0 : i32
    %c0_i32_0 = arith.constant 0 : i32
    %c0_i32_1 = arith.constant 0 : i32
    return %c0_i32, %c0_i32_0 : i32, i32
  }
  func.func @transform_5(%arg0: i32) -> (i32, i32) {
    %c0_i32 = arith.constant 0 : i32
    %c0_i32_0 = arith.constant 0 : i32
    %c0_i32_1 = arith.constant 0 : i32
    return %c0_i32, %c0_i32_0 : i32, i32
  }
  func.func @transform_6(%arg0: i32) -> (i32, i32, i32) {
    %c0_i32 = arith.constant 0 : i32
    %c0_i32_0 = arith.constant 0 : i32
    %c0_i32_1 = arith.constant 0 : i32
    return %c0_i32, %arg0, %c0_i32_0 : i32, i32, i32
  }
}

</mosaic_0001>

<llo_original>
// kernel: mixnet3_forward.1
$region0: #{mixnet3_forward.1}
  #allocation0 [shape = 'u32[]', space=smem, size = 0x4, offset = 0x4, fixed_abs, tag = 'smem constant byte address 0x4 - core index']
  #allocation1 [shape = 'u32[144,128]{1,0:T(1,128)}', space=vmem, size = 0x12000, scoped, tag = 'internal scratch']
  %s0 = inlined_call_operand.hbm [shape: f32[8,16], index: 0, kind: input, shape index: {}]
  %s1 = inlined_call_operand.vmem [shape: f32[16,32], index: 1, kind: input, shape index: {}]
  %s2 = inlined_call_operand.hbm [shape: f32[4,32], index: 2, kind: input, shape index: {}]
  %s3 = inlined_call_operand.vmem [shape: f32[1,32], index: 3, kind: input, shape index: {}]
  %s4 = inlined_call_operand.hbm [shape: f32[32,128], index: 4, kind: input, shape index: {}]
  %s5 = inlined_call_operand.vmem [shape: f32[1,128], index: 5, kind: input, shape index: {}]
  %s6 = inlined_call_operand.vmem [shape: f32[4,8,128], index: 6, kind: output, shape index: {}]
  %s7 = sld [smem:[#allocation0]]
  $region46: #{mixnet3_forward.1} parent=0
    _
  %s9 = ssub.s32 1, %s7
  %s10 = scalar_select 0, %s9, %s7
  $region1: #{mixnet3_forward.1} parent=0
    #allocation2 [shape = 'u8[4096]{0}', space=vmem, size = 0x1000, scoped, tag = 'input window, operand 0, single buffered']
    #allocation3 [shape = 's32[1]{0}', space=sflag, size = 0x4, scoped, tag = 'scoped memory for mixnet3_forward.1']
    #allocation4 [shape = 'u8[2048]{0}', space=vmem, size = 0x800, scoped, tag = 'input window, operand 2, single buffered']
    #allocation5 [shape = 's32[1]{0}', space=sflag, size = 0x4, scoped, tag = 'scoped memory for mixnet3_forward.1']
    #allocation6 [shape = 'u8[16384]{0}', space=vmem, size = 0x4000, scoped, tag = 'input window, operand 4, single buffered']
    %11 = vsyncpa [#allocation3], 0
    %12 = vsyncpa [#allocation5], 0
    // Predicated region
    $region2: #{mixnet3_forward.1} parent=1 // pred_check
      _
    $region3: #{mixnet3_forward.1} parent=1 // pred_check_branch
      %14 = sbr.rel (0) target = $region5
    $region4: #{mixnet3_forward.1} parent=1 // pred_region
      %s16 = ssub.s32 128, 128
      %17 = vsyncadd [#allocation3], %s16
      %s19 = sshll.u32 [#allocation2], 4
      %s20 = int_to_ptr.vmem [resolvable:$true] %s19
      %22 = dma.hbm_to_vmem [thread:$0]  %s0, 128, %s20, [#allocation3]
    $region5: #{mixnet3_forward.1} parent=1 // pred_fallthru
      _
    // Predicated region
    $region6: #{mixnet3_forward.1} parent=1 // pred_check
      _
    $region7: #{mixnet3_forward.1} parent=1 // pred_check_branch
      %24 = sbr.rel (0) target = $region9
    $region8: #{mixnet3_forward.1} parent=1 // pred_region
      _
    $region9: #{mixnet3_forward.1} parent=1 // pred_fallthru
      _
    // Predicated region
    $region10: #{mixnet3_forward.1} parent=1 // pred_check
      _
    $region11: #{mixnet3_forward.1} parent=1 // pred_check_branch
      %26 = sbr.rel (0) target = $region13
    $region12: #{mixnet3_forward.1} parent=1 // pred_region
      %s28 = ssub.s32 64, 64
      %29 = vsyncadd [#allocation5], %s28
      %s31 = sshll.u32 [#allocation4], 4
      %s32 = int_to_ptr.vmem [resolvable:$true] %s31
      %34 = dma.hbm_to_vmem [thread:$0]  %s2, 64, %s32, [#allocation5]
    $region13: #{mixnet3_forward.1} parent=1 // pred_fallthru
      _
    // Predicated region
    $region14: #{mixnet3_forward.1} parent=1 // pred_check
      _
    $region15: #{mixnet3_forward.1} parent=1 // pred_check_branch
      %36 = sbr.rel (0) target = $region17
    $region16: #{mixnet3_forward.1} parent=1 // pred_region
      _
    $region17: #{mixnet3_forward.1} parent=1 // pred_fallthru
      _
    // Predicated region
    $region18: #{mixnet3_forward.1} parent=1 // pred_check
      _
    $region19: #{mixnet3_forward.1} parent=1 // pred_check_branch
      %38 = sbr.rel (0) target = $region21
    $region20: #{mixnet3_forward.1} parent=1 // pred_region
      %s40 = ssub.s32 512, 512
      %41 = vsyncadd [#allocation5], %s40
      %s42 = sshll.u32 [#allocation6], 4
      %s43 = int_to_ptr.vmem [resolvable:$true] %s42
      %48 = dma.hbm_to_vmem [thread:$0]  %s4, 512, %s43, [#allocation5], 128, 128, 8
    $region21: #{mixnet3_forward.1} parent=1 // pred_fallthru
      _
    // Predicated region
    $region22: #{mixnet3_forward.1} parent=1 // pred_check
      _
    $region23: #{mixnet3_forward.1} parent=1 // pred_check_branch
      %50 = sbr.rel (0) target = $region25
    $region24: #{mixnet3_forward.1} parent=1 // pred_region
      _
    $region25: #{mixnet3_forward.1} parent=1 // pred_fallthru
      _
    // Predicated region
    $region26: #{mixnet3_forward.1} parent=1 // pred_check
      _
    $region27: #{mixnet3_forward.1} parent=1 // pred_check_branch
      %52 = sbr.rel (0) target = $region29
    $region28: #{mixnet3_forward.1} parent=1 // pred_region
      %53 = dma.done [#allocation3], 128
    $region29: #{mixnet3_forward.1} parent=1 // pred_fallthru
      _
    // Predicated region
    $region30: #{mixnet3_forward.1} parent=1 // pred_check
      _
    $region31: #{mixnet3_forward.1} parent=1 // pred_check_branch
      %55 = sbr.rel (0) target = $region33
    $region32: #{mixnet3_forward.1} parent=1 // pred_region
      %56 = dma.done [#allocation5], 64
    $region33: #{mixnet3_forward.1} parent=1 // pred_fallthru
      _
    // Predicated region
    $region34: #{mixnet3_forward.1} parent=1 // pred_check
      _
    $region35: #{mixnet3_forward.1} parent=1 // pred_check_branch
      %58 = sbr.rel (0) target = $region37
    $region36: #{mixnet3_forward.1} parent=1 // pred_region
      %59 = dma.done [#allocation5], 512
    $region37: #{mixnet3_forward.1} parent=1 // pred_fallthru
      _
    %v60 = vld [vmem:[#allocation2] sm:$0xff]
    %v61 = vld [vmem:[%s1] sm:$0xff]
    %v62 = vld [vmem:[%s1 + $0x8] sm:$0xff]
    %v63 = vld [vmem:[%s3] sm:$0x1]
    %v65 = vlaneseq
    %v66 = vshrl.u32 %v65, 7
    %v67 = vsub.s32 0, %v66
    %v68 = vrot.slane %v63, %v67
    %vm70 = vcmask 130048
    %v72 = vsel %vm70, %v60, 0
    %74 = vmatprep.subr.mxu0 0.0
    %75 = vmatpush1.msra.mxu0 %v61
    %76 = vmatprep.subr.mxu0 0.0
    %77 = vmatpush1.msra.mxu0 %v62
    %78 = vmatprep.subr.mxu0 0.0
    %79 = vmatpush1.msra.mxu0 0.0
    %80 = vmatprep.subr.mxu0 0.0
    %81 = vmatpush1.msra.mxu0 0.0
    %82 = vmatprep.subr.mxu0 0.0
    %83 = vmatpush1.msra.mxu0 0.0
    %84 = vmatprep.subr.mxu0 0.0
    %85 = vmatpush1.msra.mxu0 0.0
    %86 = vmatprep.subr.mxu0 0.0
    %87 = vmatpush1.msra.mxu0 0.0
    %88 = vmatprep.subr.mxu0 0.0
    %89 = vmatpush1.msra.mxu0 0.0
    %90 = vmatprep.subr.mxu0 0.0
    %91 = vmatpush1.msra.mxu0 0.0
    %92 = vmatprep.subr.mxu0 0.0
    %93 = vmatpush1.msra.mxu0 0.0
    %94 = vmatprep.subr.mxu0 0.0
    %95 = vmatpush1.msra.mxu0 0.0
    %96 = vmatprep.subr.mxu0 0.0
    %97 = vmatpush1.msra.mxu0 0.0
    %98 = vmatprep.subr.mxu0 0.0
    %99 = vmatpush1.msra.mxu0 0.0
    %100 = vmatprep.subr.mxu0 0.0
    %101 = vmatpush1.msra.mxu0 0.0
    %102 = vmatprep.subr.mxu0 0.0
    %103 = vmatpush1.msra.mxu0 0.0
    %104 = vmatprep.subr.mxu0 0.0
    %105 = vmatpush1.msra.mxu0 0.0
    %106 = vmatprep.subr.mxu0 0.0
    %107 = vmatpush1.msra.mxu0 0.0
    %108 = vmatprep.subr.mxu0 0.0
    %109 = vmatpush1.msra.mxu0 0.0
    %110 = vmatprep.subr.mxu0 0.0
    %111 = vmatpush1.msra.mxu0 0.0
    %112 = vmatprep.subr.mxu0 0.0
    %113 = vmatpush1.msra.mxu0 0.0
    %114 = vmatprep.subr.mxu0 0.0
    %115 = vmatpush1.msra.mxu0 0.0
    %116 = vmatprep.subr.mxu0 0.0
    %117 = vmatpush1.msra.mxu0 0.0
    %118 = vmatprep.subr.mxu0 0.0
    %119 = vmatpush1.msra.mxu0 0.0
    %120 = vmatprep.subr.mxu0 0.0
    %121 = vmatpush1.msra.mxu0 0.0
    %122 = vmatprep.subr.mxu0 0.0
    %123 = vmatpush1.msra.mxu0 0.0
    %124 = vmatprep.subr.mxu0 0.0
    %125 = vmatpush1.msra.mxu0 0.0
    %126 = vmatprep.subr.mxu0 0.0
    %127 = vmatpush1.msra.mxu0 0.0
    %128 = vmatprep.subr.mxu0 0.0
    %129 = vmatpush1.msra.mxu0 0.0
    %130 = vmatprep.subr.mxu0 0.0
    %131 = vmatpush1.msra.mxu0 0.0
    %132 = vmatprep.subr.mxu0 0.0
    %133 = vmatpush1.msra.mxu0 0.0
    %134 = vmatprep.subr.mxu0 0.0
    %135 = vmatpush1.msra.mxu0 0.0
    %136 = vmatprep.subr.mxu0 0.0
    %137 = vmatpush1.msra.mxu0 0.0
    %138 = vmatprep.mubr.f32.mxu0 0.0
    %139 = vmatmul.mubr.f32.gmra.mrb[0].mxu0 %v72
    %v140 = vpop.f32.mrb[0].mxu0
    %v141 = vadd.f32 %v68, %v140
    %v142 = vpop.f32.mrb[0].mxu0
    %143 = vdwg.mxu0
    %v144 = vld [vmem:[#allocation4] sm:$0xf]
    %v147 = vunpack.c.l.s4 1966171168
    %v148 = vunpack.c.0.s8 %v147
    %v149 = vlaneseq
    %v150 = vshrl.u32 %v149, 7
    %v151 = vsub.s32 %v148, %v150
    %v152 = vrot.slane %v144, %v151
    %v153 = vcombine.high %v152, %v152
    %v155 = vunpack.c.l.s4 1966171168
    %v156 = vunpack.c.0.s8 %v155
    %v157 = vlaneseq
    %v158 = vshrl.u32 %v157, 7
    %v159 = vsub.s32 %v156, %v158
    %v160 = vrot.slane %v152, %v159
    %v162 = vunpack.c.l.s4 1966171168
    %v163 = vunpack.c.0.s8 %v162
    %v164 = vlaneseq
    %v165 = vshrl.u32 %v164, 7
    %v166 = vsub.s32 %v163, %v165
    %v167 = vrot.slane %v153, %v166
    %v168 = vcombine.high %v160, %v160
    %v169 = vcombine.high %v167, %v167
    %v170 = vlaneseq
    %v171 = vshrl.u32 %v170, 7
    %v172 = vsub.s32 0, %v171
    %v173 = vrot.slane %v160, %v172
    %v174 = vlaneseq
    %v175 = vshrl.u32 %v174, 7
    %v176 = vsub.s32 0, %v175
    %v177 = vrot.slane %v167, %v176
    %v178 = vlaneseq
    %v179 = vshrl.u32 %v178, 7
    %v180 = vsub.s32 0, %v179
    %v181 = vrot.slane %v168, %v180
    %v182 = vlaneseq
    %v183 = vshrl.u32 %v182, 7
    %v184 = vsub.s32 0, %v183
    %v185 = vrot.slane %v169, %v184
    %v190 = vadd.f32 %v141, %v173
    %v191 = vadd.f32 %v141, %v177
    %v192 = vadd.f32 %v141, %v181
    %v193 = vadd.f32 %v141, %v185
    %v194 = vmax.f32 %v190, 0.0
    %v195 = vmax.f32 %v191, 0.0
    %v196 = vmax.f32 %v192, 0.0
    %v197 = vmax.f32 %v193, 0.0
    %v198 = vld [vmem:[#allocation6] sm:$0xff]
    %v199 = vld [vmem:[#allocation6 + $0x8] sm:$0xff]
    %v200 = vld [vmem:[#allocation6 + $0x10] sm:$0xff]
    %v201 = vld [vmem:[#allocation6 + $0x18] sm:$0xff]
    %v202 = vld [vmem:[%s5] sm:$0x1]
    %v204 = vlaneseq
    %v205 = vshrl.u32 %v204, 7
    %v206 = vsub.s32 0, %v205
    %v207 = vrot.slane %v202, %v206
    %vm209 = vcmask 261120
    %v211 = vsel %vm209, %v194, 0
    %v214 = vsel %vm209, %v195, 0
    %v217 = vsel %vm209, %v196, 0
    %v220 = vsel %vm209, %v197, 0
    %222 = vmatprep.subr.mxu0 0.0
    %223 = vmatpush1.msra.mxu0 %v198
    %224 = vmatprep.subr.mxu0 0.0
    %225 = vmatpush1.msra.mxu0 %v199
    %226 = vmatprep.subr.mxu0 0.0
    %227 = vmatpush1.msra.mxu0 %v200
    %228 = vmatprep.subr.mxu0 0.0
    %229 = vmatpush1.msra.mxu0 %v201
    %230 = vmatprep.subr.mxu0 0.0
    %231 = vmatpush1.msra.mxu0 0.0
    %232 = vmatprep.subr.mxu0 0.0
    %233 = vmatpush1.msra.mxu0 0.0
    %234 = vmatprep.subr.mxu0 0.0
    %235 = vmatpush1.msra.mxu0 0.0
    %236 = vmatprep.subr.mxu0 0.0
    %237 = vmatpush1.msra.mxu0 0.0
    %238 = vmatprep.subr.mxu0 0.0
    %239 = vmatpush1.msra.mxu0 0.0
    %240 = vmatprep.subr.mxu0 0.0
    %241 = vmatpush1.msra.mxu0 0.0
    %242 = vmatprep.subr.mxu0 0.0
    %243 = vmatpush1.msra.mxu0 0.0
    %244 = vmatprep.subr.mxu0 0.0
    %245 = vmatpush1.msra.mxu0 0.0
    %246 = vmatprep.subr.mxu0 0.0
    %247 = vmatpush1.msra.mxu0 0.0
    %248 = vmatprep.subr.mxu0 0.0
    %249 = vmatpush1.msra.mxu0 0.0
    %250 = vmatprep.subr.mxu0 0.0
    %251 = vmatpush1.msra.mxu0 0.0
    %252 = vmatprep.subr.mxu0 0.0
    %253 = vmatpush1.msra.mxu0 0.0
    %254 = vmatprep.subr.mxu0 0.0
    %255 = vmatpush1.msra.mxu0 0.0
    %256 = vmatprep.subr.mxu0 0.0
    %257 = vmatpush1.msra.mxu0 0.0
    %258 = vmatprep.subr.mxu0 0.0
    %259 = vmatpush1.msra.mxu0 0.0
    %260 = vmatprep.subr.mxu0 0.0
    %261 = vmatpush1.msra.mxu0 0.0
    %262 = vmatprep.subr.mxu0 0.0
    %263 = vmatpush1.msra.mxu0 0.0
    %264 = vmatprep.subr.mxu0 0.0
    %265 = vmatpush1.msra.mxu0 0.0
    %266 = vmatprep.subr.mxu0 0.0
    %267 = vmatpush1.msra.mxu0 0.0
    %268 = vmatprep.subr.mxu0 0.0
    %269 = vmatpush1.msra.mxu0 0.0
    %270 = vmatprep.subr.mxu0 0.0
    %271 = vmatpush1.msra.mxu0 0.0
    %272 = vmatprep.subr.mxu0 0.0
    %273 = vmatpush1.msra.mxu0 0.0
    %274 = vmatprep.subr.mxu0 0.0
    %275 = vmatpush1.msra.mxu0 0.0
    %276 = vmatprep.subr.mxu0 0.0
    %277 = vmatpush1.msra.mxu0 0.0
    %278 = vmatprep.subr.mxu0 0.0
    %279 = vmatpush1.msra.mxu0 0.0
    %280 = vmatprep.subr.mxu0 0.0
    %281 = vmatpush1.msra.mxu0 0.0
    %282 = vmatprep.subr.mxu0 0.0
    %283 = vmatpush1.msra.mxu0 0.0
    %284 = vmatprep.subr.mxu0 0.0
    %285 = vmatpush1.msra.mxu0 0.0
    %286 = vmatprep.mubr.f32.mxu0 0.0
    %287 = vmatmul.mubr.f32.gmra.mrb[0].mxu0 %v211
    %v288 = vpop.f32.mrb[0].mxu0
    %v289 = vadd.f32 %v207, %v288
    %v290 = vpop.f32.mrb[0].mxu0
    %291 = vmatprep.mubr.f32.mxu0 0.0
    %292 = vmatmul.mubr.f32.gmra.mrb[0].mxu0 %v214
    %v293 = vpop.f32.mrb[0].mxu0
    %v294 = vadd.f32 %v207, %v293
    %v295 = vpop.f32.mrb[0].mxu0
    %296 = vmatprep.mubr.f32.mxu0 0.0
    %297 = vmatmul.mubr.f32.gmra.mrb[0].mxu0 %v217
    %v298 = vpop.f32.mrb[0].mxu0
    %v299 = vadd.f32 %v207, %v298
    %v300 = vpop.f32.mrb[0].mxu0
    %301 = vmatprep.mubr.f32.mxu0 0.0
    %302 = vmatmul.mubr.f32.gmra.mrb[0].mxu0 %v220
    %v303 = vpop.f32.mrb[0].mxu0
    %v304 = vadd.f32 %v207, %v303
    %v305 = vpop.f32.mrb[0].mxu0
    %306 = vdwg.mxu0
    %v307 = vlaneseq
    %v308 = vand.u32 %v307, 127
    %vm309 = vcmp.lt.s32.totalorder %v308, 4
    %v310 = vand.u32 2147483647, %v289
    %v311 = vand.u32 2147483647, %v294
    %v312 = vand.u32 2147483647, %v299
    %v313 = vand.u32 2147483647, %v304
    %v314 = vsel %vm309, %v310, %v289
    %v315 = vsel %vm309, %v311, %v294
    %v316 = vsel %vm309, %v312, %v299
    %v317 = vsel %vm309, %v313, %v304
    %318 = vst [vmem:[%s6] sm:$0xff] %v314
    %319 = vst [vmem:[%s6 + $0x8] sm:$0xff] %v315
    %320 = vst [vmem:[%s6 + $0x10] sm:$0xff] %v316
    %321 = vst [vmem:[%s6 + $0x18] sm:$0xff] %v317
    // Predicated region
    $region38: #{mixnet3_forward.1} parent=1 // pred_check
      _
    $region39: #{mixnet3_forward.1} parent=1 // pred_check_branch
      %323 = sbr.rel (0) target = $region41
    $region40: #{mixnet3_forward.1} parent=1 // pred_region
      _
    $region41: #{mixnet3_forward.1} parent=1 // pred_fallthru
      _
    // Predicated region
    $region42: #{mixnet3_forward.1} parent=1 // pred_check
      _
    $region43: #{mixnet3_forward.1} parent=1 // pred_check_branch
      %325 = sbr.rel (0) target = $region45
    $region44: #{mixnet3_forward.1} parent=1 // pred_region
      _
    $region45: #{mixnet3_forward.1} parent=1 // pred_fallthru
      _
    %326 = vsyncpa [#allocation3], 1
    %327 = vsyncpa [#allocation5], 1

</llo_original>
